<compile_context>
chip_gen: v5e
topology: v5e:2x2
jax: 0.10.0
libtpu: 0.0.40
codegen_flags: <defaults>
</compile_context>

<pallas_src>
import jax
import jax.numpy as jnp
from jax.experimental import pallas as pl
from jax.experimental.pallas import tpu as pltpu

EPS = 1e-5  # nn.BatchNorm3d default eps


def _vmem_capacity_bytes() -> int:
    try:
        return int(pltpu.get_tpu_info().vmem_capacity_bytes)
    except Exception:
        return 64 * 1024 * 1024  # conservative fallback (v7x per-core VMEM)


def _pick_tile_m(m_pad: int, bytes_per_lane: int, vmem_budget: int) -> int:
    """Largest multiple-of-128 divisor of m_pad whose resident VMEM fits the budget."""
    q = m_pad // 128
    cap_units = max(1, vmem_budget // max(bytes_per_lane * 128, 1))
    best = 1
    i = 1
    while i * i <= q:
        if q % i == 0:
            for d in (i, q // i):
                if d <= cap_units and d > best:
                    best = d
        i += 1
    return best * 128


# ---------------- pass 1: streaming BatchNorm statistics (per-n partials) ----------------
def _stats_kernel(pooled_ref, c_ref, sum_ref, smat_ref):
    # pooled_ref: (1, Cin, TM)   pooled activations, voxels on lanes / channels on sublanes
    # c_ref:      (Cin, 1)       per-channel reference shift (stability)
    # sum_ref:    (1, Cin, 1)    per-n running sum of (x - c)          (accumulator over M)
    # smat_ref:   (1, Cin, Cin)  per-n running (x - c)(x - c)^T moment (accumulator over M)
    @pl.when(pl.program_id(1) == 0)
    def _init():
        sum_ref[...] = jnp.zeros_like(sum_ref)
        smat_ref[...] = jnp.zeros_like(smat_ref)

    xc = pooled_ref[0].astype(jnp.float32) - c_ref[...]        # (Cin, TM)
    sum_ref[0] += jnp.sum(xc, axis=1, keepdims=True)
    # contract the voxel/lane axis on the MXU -> (Cin, Cin)
    smat_ref[0] += jax.lax.dot_general(
        xc, xc, (((1,), (1,)), ((), ())), preferred_element_type=jnp.float32)


# ---------------- pass 2: folded conv + BN affine + ReLU ----------------
def _conv_bn_relu_kernel(pooled_ref, wfold_ref, shift_ref, o_ref):
    # pooled_ref: (1, Cin, TM); wfold_ref: (Cout, Cin); shift_ref: (Cout, 1); o_ref: (1, Cout, TM)
    y = jnp.dot(wfold_ref[...], pooled_ref[0], preferred_element_type=jnp.float32)
    y = y + shift_ref[...]
    o_ref[0] = jnp.maximum(y, 0.0).astype(o_ref.dtype)


def downsample_pool_blk(x, conv_w, conv_b, bn_gamma, bn_beta, pool_k=2,
                        compute_dtype=None, out_dtype=None):
    """x: (N, Cin, D, H, W).  conv_w: (Cout, Cin[,1,1,1]).  Returns (N, Cout, D', H', W')."""
    N, Cin, D, H, W = x.shape
    k = pool_k
    assert D % k == 0 and H % k == 0 and W % k == 0
    Cout = conv_w.shape[0]
    D2, H2, W2 = D // k, H // k, W // k
    M_sp = D2 * H2 * W2
    M_total = N * M_sp
    compute_dtype = compute_dtype if compute_dtype is not None else x.dtype
    out_dtype = out_dtype if out_dtype is not None else x.dtype

    # ---- MaxPool3d as a fused XLA reshape+max prologue (no transpose materialized) ----
    # TODO(synk): doing the window extraction inside pass 1 (reading raw NCDHW slabs) needs a
    #             lane-strided pair-max along W plus a lane-compacting store; kept in XLA for
    #             robustness -- this reads x exactly once and writes only the pooled tensor.
    pooled = x.reshape(N, Cin, D2, k, H2, k, W2, k).max(axis=(3, 5, 7))
    pooled = pooled.reshape(N, Cin, M_sp).astype(compute_dtype)

    # Pad the voxel axis to a lane-dense multiple of 128 (unmasked vst). Zero padding is
    # harmless: zeros contribute nothing to the (unshifted) moments, we divide by the true
    # voxel count, and the padded output tail is sliced off.
    M_pad = -(-M_sp // 128) * 128
    if M_pad != M_sp:
        pooled = jnp.pad(pooled, ((0, 0), (0, 0), (0, M_pad - M_sp)))
        c = jnp.zeros((Cin,), jnp.float32)   # keep padded lanes exactly zero-contributing
    else:
        # cheap per-channel reference point -> reduces E[xx^T] - mean*mean^T cancellation
        c = pooled[:, :, :min(128, M_sp)].astype(jnp.float32).mean(axis=(0, 2))
    c_col = c.reshape(Cin, 1)

    # ---- VMEM-aware tile along the voxel/lane axis ----
    csize = jnp.dtype(compute_dtype).itemsize
    osize = jnp.dtype(out_dtype).itemsize
    bpl_pass1 = 2 * Cin * csize                        # double-buffered pooled input
    bpl_pass2 = 2 * Cin * csize + 2 * Cout * osize     # pooled in + conv out, double-buffered
    bytes_per_lane = max(bpl_pass1, bpl_pass2)
    vmem_cap = _vmem_capacity_bytes()
    TM = _pick_tile_m(M_pad, bytes_per_lane, int(0.4 * vmem_cap))
    num_m = M_pad // TM
    vmem_limit = int(min(vmem_cap,
                         max(32 * 1024 * 1024,
                             int(1.5 * bytes_per_lane * TM) + (4 << 20))))

    # ---- pass 1: per-n BN statistics (N axis megacore-parallel, M axis accumulated) ----
    p_sum, p_smat = pl.pallas_call(
        _stats_kernel,
        grid=(N, num_m),
        in_specs=[
            pl.BlockSpec((1, Cin, TM), lambda n, m: (n, 0, m)),
            pl.BlockSpec((Cin, 1), lambda n, m: (0, 0)),
        ],
        out_specs=[
            pl.BlockSpec((1, Cin, 1), lambda n, m: (n, 0, 0)),
            pl.BlockSpec((1, Cin, Cin), lambda n, m: (n, 0, 0)),
        ],
        out_shape=[
            jax.ShapeDtypeStruct((N, Cin, 1), jnp.float32),
            jax.ShapeDtypeStruct((N, Cin, Cin), jnp.float32),
        ],
        compiler_params=pltpu.CompilerParams(
            dimension_semantics=("parallel", "arbitrary"),
            vmem_limit_bytes=vmem_limit),
    )(pooled, c_col)

    # ---- fold Conv(1x1x1) + training-mode BatchNorm into a single per-channel affine ----
    # mean_y = W mean_x + b ; var_y = W Cov(x) W^T (biased, matches BN training mode).
    # The conv bias cancels exactly against the batch-mean subtraction.
    # TODO(synk): eval-mode BN (running_mean/running_var) and running-stat updates not modeled.
    w_mat = conv_w.reshape(Cout, Cin).astype(jnp.float32)
    b_vec = conv_b.reshape(Cout).astype(jnp.float32)
    sum_sh = p_sum.sum(axis=0)[:, 0]                     # (Cin,)   sum of (x - c)
    smat_sh = p_smat.sum(axis=0)                         # (Cin, Cin)
    m_sh = sum_sh / M_total
    mean_x = m_sh + c                                    # (Cin,)
    cov_x = smat_sh / M_total - jnp.outer(m_sh, m_sh)    # (Cin, Cin)
    var_y = jnp.maximum(jnp.einsum("ci,ij,cj->c", w_mat, cov_x, w_mat), 0.0)
    scale = bn_gamma.astype(jnp.float32) * jax.lax.rsqrt(var_y + EPS)     # (Cout,)
    mean_y = w_mat @ mean_x + b_vec
    shift = (bn_beta.astype(jnp.float32) + scale * (b_vec - mean_y)).reshape(Cout, 1)
    w_fold = (scale[:, None] * w_mat).astype(compute_dtype)               # (Cout, Cin)

    # ---- pass 2: folded conv + BN affine + ReLU (embarrassingly parallel) ----
    out = pl.pallas_call(
        _conv_bn_relu_kernel,
        grid=(N, num_m),
        in_specs=[
            pl.BlockSpec((1, Cin, TM), lambda n, m: (n, 0, m)),
            pl.BlockSpec((Cout, Cin), lambda n, m: (0, 0)),
            pl.BlockSpec((Cout, 1), lambda n, m: (0, 0)),
        ],
        out_specs=pl.BlockSpec((1, Cout, TM), lambda n, m: (n, 0, m)),
        out_shape=jax.ShapeDtypeStruct((N, Cout, M_pad), out_dtype),
        compiler_params=pltpu.CompilerParams(
            dimension_semantics=("parallel", "parallel"),
            vmem_limit_bytes=vmem_limit),
    )(pooled, w_fold, shift)

    # Output already in pooled-NCDHW order -> slice off the lane padding, free reshape.
    return out[:, :, :M_sp].reshape(N, Cout, D2, H2, W2)


if __name__ == "__main__":
    key = jax.random.PRNGKey(0)
    k_x, k_w, k_b = jax.random.split(key, 3)

    N, Cin, Cout = 2, 4, 8
    D = H = W = 16
    pool_k = 2

    fan_in = Cin * 1 * 1 * 1
    bound = 1.0 / (fan_in ** 0.5)
    conv_w = jax.random.uniform(k_w, (Cout, Cin), jnp.float32, -bound, bound)
    conv_b = jax.random.uniform(k_b, (Cout,), jnp.float32, -bound, bound)
    bn_gamma = jnp.ones((Cout,), jnp.float32)
    bn_beta = jnp.zeros((Cout,), jnp.float32)

    x = jax.random.normal(k_x, (N, Cin, D, H, W), jnp.float32)

    y = downsample_pool_blk(x, conv_w, conv_b, bn_gamma, bn_beta, pool_k=pool_k)
    jax.block_until_ready(y)
    assert y.shape == (N, Cout, D // pool_k, H // pool_k, W // pool_k)

    # pure-JAX reference (training-mode BatchNorm, biased batch variance)
    xp = x.reshape(N, Cin, D // 2, 2, H // 2, 2, W // 2, 2).max(axis=(3, 5, 7))
    yr = jnp.einsum("oc,ncdhw->nodhw", conv_w, xp) + conv_b[None, :, None, None, None]
    mu = yr.mean(axis=(0, 2, 3, 4), keepdims=True)
    var = yr.var(axis=(0, 2, 3, 4), keepdims=True)
    yr = (yr - mu) * jax.lax.rsqrt(var + EPS)
    yr = jnp.maximum(yr * bn_gamma[None, :, None, None, None]
                     + bn_beta[None, :, None, None, None], 0.0)

    max_err = float(jnp.max(jnp.abs(y - yr)))
    assert max_err < 1e-3, f"mismatch vs reference: {max_err}"
    print("KERNEL_OK")
</pallas_src>

<mosaic_0001>
module attributes {stable_mosaic.version = 11 : i64} {
  func.func @_stats_kernel(%arg0: i32, %arg1: i32, %arg2: memref<1x4x512xf32, #tpu.memory_space<vmem>>, %arg3: memref<4x1xf32, #tpu.memory_space<vmem>>, %arg4: memref<1x4x1xf32, #tpu.memory_space<vmem>>, %arg5: memref<1x4x4xf32, #tpu.memory_space<vmem>>) attributes {dimension_semantics = [#tpu.dimension_semantics<parallel>, #tpu.dimension_semantics<arbitrary>], iteration_bounds = array<i64: 2, 1>, scalar_prefetch = 0 : i64, scratch_operands = 0 : i64, tpu.core_type = #tpu.core_type<tc>, window_params = [{transform_indices = @transform_0, window_bounds = array<i64: 1, 4, 512>}, {pipeline_mode = #tpu.pipeline_mode<synchronous>, transform_indices = @transform_1, window_bounds = array<i64: 4, 1>}, {transform_indices = @transform_2, window_bounds = array<i64: 1, 4, 1>}, {transform_indices = @transform_3, window_bounds = array<i64: 1, 4, 4>}]} {
    %c0_i32 = arith.constant 0 : i32
    %0 = arith.cmpi eq, %arg1, %c0_i32 : i32
    %1 = arith.extui %0 : i1 to i32
    %c0_i32_0 = arith.constant 0 : i32
    %2 = arith.cmpi ne, %1, %c0_i32_0 : i32
    scf.if %2 {
      %cst_18 = arith.constant 0.000000e+00 : f32
      %23 = vector.broadcast %cst_18 : f32 to vector<1x4x1xf32>
      %c0_19 = arith.constant 0 : index
      %c0_20 = arith.constant 0 : index
      %c0_21 = arith.constant 0 : index
      %24 = vector.load %arg4[%c0_19, %c0_20, %c0_21] : memref<1x4x1xf32, #tpu.memory_space<vmem>>, vector<1x4x1xf32>
      tpu.vector_store %arg4[%c0_19, %c0_20, %c0_21], %23 {strides = array<i32>} : memref<1x4x1xf32, #tpu.memory_space<vmem>>, vector<1x4x1xf32>,
      %cst_22 = arith.constant 0.000000e+00 : f32
      %25 = vector.broadcast %cst_22 : f32 to vector<1x4x4xf32>
      %c0_23 = arith.constant 0 : index
      %c0_24 = arith.constant 0 : index
      %c0_25 = arith.constant 0 : index
      %26 = vector.load %arg5[%c0_23, %c0_24, %c0_25] : memref<1x4x4xf32, #tpu.memory_space<vmem>>, vector<1x4x4xf32>
      tpu.vector_store %arg5[%c0_23, %c0_24, %c0_25], %25 {strides = array<i32>} : memref<1x4x4xf32, #tpu.memory_space<vmem>>, vector<1x4x4xf32>,
    } else {
    }
    %c0 = arith.constant 0 : index
    %c0_1 = arith.constant 0 : index
    %c0_2 = arith.constant 0 : index
    %3 = vector.load %arg2[%c0, %c0_1, %c0_2] : memref<1x4x512xf32, #tpu.memory_space<vmem>>, vector<1x4x512xf32>
    %4 = vector.shape_cast %3 : vector<1x4x512xf32> to vector<4x512xf32>
    %c0_3 = arith.constant 0 : index
    %c0_4 = arith.constant 0 : index
    %5 = vector.load %arg3[%c0_3, %c0_4] : memref<4x1xf32, #tpu.memory_space<vmem>>, vector<4x1xf32>
    %6 = vector.broadcast %5 : vector<4x1xf32> to vector<4x512xf32>
    %7 = arith.subf %4, %6 : vector<4x512xf32>
    %c0_5 = arith.constant 0 : index
    %c0_6 = arith.constant 0 : index
    %c0_7 = arith.constant 0 : index
    %8 = vector.load %arg4[%c0_5, %c0_6, %c0_7] : memref<1x4x1xf32, #tpu.memory_space<vmem>>, vector<1x4x1xf32>
    %9 = vector.shape_cast %8 : vector<1x4x1xf32> to vector<4x1xf32>
    %cst = arith.constant dense<0.000000e+00> : vector<4xf32>
    %10 = vector.multi_reduction <add>, %7, %cst [1] : vector<4x512xf32> to vector<4xf32>
    %11 = vector.shape_cast %10 : vector<4xf32> to vector<4x1xf32>
    %12 = arith.addf %9, %11 : vector<4x1xf32>
    %c0_8 = arith.constant 0 : index
    %c0_9 = arith.constant 0 : index
    %c0_10 = arith.constant 0 : index
    %13 = vector.load %arg4[%c0_8, %c0_9, %c0_10] : memref<1x4x1xf32, #tpu.memory_space<vmem>>, vector<1x4x1xf32>
    %14 = vector.shape_cast %13 : vector<1x4x1xf32> to vector<4x1xf32>
    %15 = vector.shape_cast %12 : vector<4x1xf32> to vector<1x4x1xf32>
    tpu.vector_store %arg4[%c0_8, %c0_9, %c0_10], %15 {strides = array<i32>} : memref<1x4x1xf32, #tpu.memory_space<vmem>>, vector<1x4x1xf32>,
    %c0_11 = arith.constant 0 : index
    %c0_12 = arith.constant 0 : index
    %c0_13 = arith.constant 0 : index
    %16 = vector.load %arg5[%c0_11, %c0_12, %c0_13] : memref<1x4x4xf32, #tpu.memory_space<vmem>>, vector<1x4x4xf32>
    %17 = vector.shape_cast %16 : vector<1x4x4xf32> to vector<4x4xf32>
    %cst_14 = arith.constant dense<0.000000e+00> : vector<4x4xf32>
    %18 = tpu.matmul %7, %7, %cst_14 {dimension_numbers = #tpu.dot_dimension_numbers<[1], [1], [0], [0], [0, 0, 1, 0], [], []>} : vector<4x512xf32>, vector<4x512xf32>, vector<4x4xf32> -> vector<4x4xf32>
    %19 = arith.addf %17, %18 : vector<4x4xf32>
    %c0_15 = arith.constant 0 : index
    %c0_16 = arith.constant 0 : index
    %c0_17 = arith.constant 0 : index
    %20 = vector.load %arg5[%c0_15, %c0_16, %c0_17] : memref<1x4x4xf32, #tpu.memory_space<vmem>>, vector<1x4x4xf32>
    %21 = vector.shape_cast %20 : vector<1x4x4xf32> to vector<4x4xf32>
    %22 = vector.shape_cast %19 : vector<4x4xf32> to vector<1x4x4xf32>
    tpu.vector_store %arg5[%c0_15, %c0_16, %c0_17], %22 {strides = array<i32>} : memref<1x4x4xf32, #tpu.memory_space<vmem>>, vector<1x4x4xf32>,
    return
  }
  func.func @transform_0(%arg0: i32, %arg1: i32) -> (i32, i32, i32) {
    %c0_i32 = arith.constant 0 : i32
    %c0_i32_0 = arith.constant 0 : i32
    return %arg0, %c0_i32, %arg1 : i32, i32, i32
  }
  func.func @transform_1(%arg0: i32, %arg1: i32) -> (i32, i32) {
    %c0_i32 = arith.constant 0 : i32
    %c0_i32_0 = arith.constant 0 : i32
    %c0_i32_1 = arith.constant 0 : i32
    return %c0_i32, %c0_i32_0 : i32, i32
  }
  func.func @transform_2(%arg0: i32, %arg1: i32) -> (i32, i32, i32) {
    %c0_i32 = arith.constant 0 : i32
    %c0_i32_0 = arith.constant 0 : i32
    %c0_i32_1 = arith.constant 0 : i32
    return %arg0, %c0_i32, %c0_i32_0 : i32, i32, i32
  }
  func.func @transform_3(%arg0: i32, %arg1: i32) -> (i32, i32, i32) {
    %c0_i32 = arith.constant 0 : i32
    %c0_i32_0 = arith.constant 0 : i32
    %c0_i32_1 = arith.constant 0 : i32
    return %arg0, %c0_i32, %c0_i32_0 : i32, i32, i32
  }
}

</mosaic_0001>

<llo_original>
// kernel: tpu_custom_call.1
$region0: #{tpu_custom_call.1}
  #allocation0 [shape = 'u32[]', space=smem, size = 0x4, offset = 0x4, fixed_abs, tag = 'smem constant byte address 0x4 - core index']
  #allocation1 [shape = 'u32[72,128]{1,0:T(1,128)}', space=vmem, size = 0x9000, scoped, tag = 'internal scratch']
  %s0 = inlined_call_operand.hbm [shape: f32[2,4,512], index: 0, kind: input, shape index: {}]
  %s1 = inlined_call_operand.vmem [shape: f32[4,1], index: 1, kind: input, shape index: {}]
  %s2 = inlined_call_operand.vmem [shape: f32[2,4,1], index: 2, kind: output, shape index: {0}]
  %s3 = inlined_call_operand.hbm [shape: f32[2,4,4], index: 3, kind: output, shape index: {1}]
  %4 = xla_tuple %s2, %s3
  %s5 = sld [smem:[#allocation0]]
  $region57: #{tpu_custom_call.1} parent=0
    _
  %s7 = ssub.s32 1, %s5
  %s8 = scalar_select 0, %s7, %s5
  $region1: #{tpu_custom_call.1} parent=0
    #allocation2 [shape = 'u8[16384]{0}', space=vmem, size = 0x4000, scoped, tag = 'input window, operand 0']
    #allocation3 [shape = 's32[2]{0}', space=sflag, size = 0x8, scoped, tag = 'scoped memory for tpu_custom_call.1']
    #allocation4 [shape = 's32[2]{0}', space=sflag, size = 0x8, scoped, tag = 'scoped memory for tpu_custom_call.1']
    #allocation5 [shape = 'u8[4096]{0}', space=vmem, size = 0x1000, scoped, tag = 'output window, operand 1']
    %9 = vsyncpa [#allocation3], 0
    %s10 = scalar_lea.sflag [#allocation3], 1
    %11 = vsyncpa %s10, 0
    %12 = vsyncpa [#allocation4], 0
    %s13 = scalar_lea.sflag [#allocation4], 1
    %14 = vsyncpa %s13, 0
    loop: start=0, step=1, limit=4
    $region2: #{tpu_custom_call.1} parent=1 // loop_pre_header
      _
    $region3: #{tpu_custom_call.1} parent=1 // loop_header
      %s16 = sphi 0, %s20
      %p17 = scmp.ge.s32.totalorder %s16, 4
      %s23 = sphi 0, %s35
      %s24 = sphi 0, %s31
      %s25 = sphi 0, %s23
      %s26 = sphi 0, %s24
      %s27 = sphi 0, %s25
      %s28 = sphi 0, %s26
      %s40 = sphi 0, %s42
      %s43 = sphi 0, %s40
      %s44 = sphi 0, %s43
      %s60 = sphi 0, %s44
      %s64 = sphi 0, %s64
      %s66 = sphi 0, %s64
      %s67 = sphi 0, %s66
      %s81 = sphi 0, %s67
      %s87 = sphi 0, %s89
      %s90 = sphi 0, %s87
      %s91 = sphi 0, %s90
      %s107 = sphi 0, %s91
      %s113 = sphi 0, %s115
      %s116 = sphi 0, %s113
      %s117 = sphi 0, %s116
      %s133 = sphi 0, %s117
    $region4: #{tpu_custom_call.1} parent=1 // loop_header_branch
      %19 = sbr.rel (%p17) target = $region8
    $region5: #{tpu_custom_call.1} parent=1 // loop_body
      %s21 = ssub.s32 %s16, 1
      %s22 = ssub.s32 %s16, 2
      %s29 = sadd.s32 1, %s24
      %p30 = scmp.ge.s32.totalorder %s29, 1
      %s31 = scalar_select %p30, 0, %s29
      %s32 = sadd.s32 1, %s23
      %s33 = scalar_select %p30, %s32, %s23
      %p34 = scmp.ge.s32.totalorder %s33, 2
      %s35 = scalar_select %p34, 0, %s33
      %s36 = ssub.s32 %s23, %s35
      %s37 = ssub.s32 %s24, %s31
      %s38 = sor.u32 %s36, %s37
      %p39 = scmp.eq.s32.totalorder %s38, 0
      %s41 = sadd.s32 %s40, 1
      %s42 = scalar_select %p39, %s40, %s41
      %p45 = pneg %p39
      %p46 = scmp.eq.s32.totalorder %s16, 1
      %p47 = por %p45, %p46
      %p48 = scmp.ne.s32.totalorder %s40, %s43
      %p49 = scmp.eq.s32.totalorder %s16, 0
      %p50 = por %p48, %p49
      %p51 = scmp.ne.s32.totalorder %s40, %s43
      %p52 = scmp.eq.s32.totalorder %s21, 1
      %p53 = por %p51, %p52
      %p54 = scmp.ne.s32.totalorder %s43, %s44
      %p55 = scmp.eq.s32.totalorder %s21, 0
      %p56 = por %p54, %p55
      %p57 = scmp.ne.s32.totalorder %s43, %s44
      %p58 = scmp.eq.s32.totalorder %s22, 1
      %p59 = por %p57, %p58
      %p61 = scmp.ne.s32.totalorder %s44, %s60
      %p62 = scmp.eq.s32.totalorder %s22, 0
      %p63 = por %p61, %p62
      %s65 = sadd.s32 %s64, 1
      %p68 = scmp.eq.s32.totalorder %s16, 1
      %p69 = scmp.ne.s32.totalorder %s64, %s66
      %p70 = scmp.eq.s32.totalorder %s16, 0
      %p71 = por %p69, %p70
      %p72 = scmp.ne.s32.totalorder %s64, %s66
      %p73 = scmp.eq.s32.totalorder %s21, 1
      %p74 = por %p72, %p73
      %p75 = scmp.ne.s32.totalorder %s66, %s67
      %p76 = scmp.eq.s32.totalorder %s21, 0
      %p77 = por %p75, %p76
      %p78 = scmp.ne.s32.totalorder %s66, %s67
      %p79 = scmp.eq.s32.totalorder %s22, 1
      %p80 = por %p78, %p79
      %p82 = scmp.ne.s32.totalorder %s67, %s81
      %p83 = scmp.eq.s32.totalorder %s22, 0
      %p84 = por %p82, %p83
      %s85 = ssub.s32 %s23, %s35
      %p86 = scmp.eq.s32.totalorder %s85, 0
      %s88 = sadd.s32 %s87, 1
      %s89 = scalar_select %p86, %s87, %s88
      %p92 = pneg %p86
      %p93 = scmp.eq.s32.totalorder %s16, 1
      %p94 = por %p92, %p93
      %p95 = scmp.ne.s32.totalorder %s87, %s90
      %p96 = scmp.eq.s32.totalorder %s16, 0
      %p97 = por %p95, %p96
      %p98 = scmp.ne.s32.totalorder %s87, %s90
      %p99 = scmp.eq.s32.totalorder %s21, 1
      %p100 = por %p98, %p99
      %p101 = scmp.ne.s32.totalorder %s90, %s91
      %p102 = scmp.eq.s32.totalorder %s21, 0
      %p103 = por %p101, %p102
      %p104 = scmp.ne.s32.totalorder %s90, %s91
      %p105 = scmp.eq.s32.totalorder %s22, 1
      %p106 = por %p104, %p105
      %p108 = scmp.ne.s32.totalorder %s91, %s107
      %p109 = scmp.eq.s32.totalorder %s22, 0
      %p110 = por %p108, %p109
      %s111 = ssub.s32 %s23, %s35
      %p112 = scmp.eq.s32.totalorder %s111, 0
      %s114 = sadd.s32 %s113, 1
      %s115 = scalar_select %p112, %s113, %s114
      %p118 = pneg %p112
      %p119 = scmp.eq.s32.totalorder %s16, 1
      %p120 = por %p118, %p119
      %p121 = scmp.ne.s32.totalorder %s113, %s116
      %p122 = scmp.eq.s32.totalorder %s16, 0
      %p123 = por %p121, %p122
      %p124 = scmp.ne.s32.totalorder %s113, %s116
      %p125 = scmp.eq.s32.totalorder %s21, 1
      %p126 = por %p124, %p125
      %p127 = scmp.ne.s32.totalorder %s116, %s117
      %p128 = scmp.eq.s32.totalorder %s21, 0
      %p129 = por %p127, %p128
      %p130 = scmp.ne.s32.totalorder %s116, %s117
      %p131 = scmp.eq.s32.totalorder %s22, 1
      %p132 = por %p130, %p131
      %p134 = scmp.ne.s32.totalorder %s117, %s133
      %p135 = scmp.eq.s32.totalorder %s22, 0
      %p136 = por %p134, %p135
      %p137 = scmp.le.s32.totalorder 1, %s16
      %p138 = scmp.lt.s32.totalorder %s16, 3
      %p139 = pnand %p137, %p138
      %p140 = pneg %p139
      // Predicated region
      $region9: #{tpu_custom_call.1} parent=5 // pred_check
        _
      $region10: #{tpu_custom_call.1} parent=5 // pred_check_branch
        %142 = sbr.rel (%p139) target = $region12
      $region11: #{tpu_custom_call.1} parent=5 // pred_region
        %s143 = ssub.s32 %s16, 1
        // Predicated region
        $region13: #{tpu_custom_call.1} parent=11 // pred_check
          %p144 = pneg %p77
        $region14: #{tpu_custom_call.1} parent=11 // pred_check_branch
          %146 = sbr.rel (%p144) target = $region16
        $region15: #{tpu_custom_call.1} parent=11 // pred_region
          _
        $region16: #{tpu_custom_call.1} parent=11 // pred_fallthru
          _
      $region12: #{tpu_custom_call.1} parent=5 // pred_fallthru
        _
      %p147 = scmp.lt.s32.totalorder %s16, 2
      // Predicated region
      $region17: #{tpu_custom_call.1} parent=5 // pred_check
        %p148 = pneg %p147
      $region18: #{tpu_custom_call.1} parent=5 // pred_check_branch
        %150 = sbr.rel (%p148) target = $region20
      $region19: #{tpu_custom_call.1} parent=5 // pred_region
        // Predicated region
        $region21: #{tpu_custom_call.1} parent=19 // pred_check
          %p151 = pneg %p50
        $region22: #{tpu_custom_call.1} parent=19 // pred_check_branch
          %153 = sbr.rel (%p151) target = $region24
        $region23: #{tpu_custom_call.1} parent=19 // pred_region
          %s154 = sand.u32 %s40, 1
          %s155 = scalar_lea.sflag [#allocation3], %s154
          %s156 = sand.u32 %s40, 1
          %s157 = smul.addr %s156, 16
          %s158 = scalar_lea.vmem [#allocation2], %s157
          %s159 = smul.u32 4, %s24
          %161 = vsyncadd %s155, 0
          %s162 = smul.addr %s23, 4
          %s163 = sadd.s32 %s159, %s162
          %s164 = smul.addr %s163, 4
          %s165 = scalar_lea.hbm %s0, %s164
          %s167 = sshll.u32 %s165, 4
          %s168 = int_to_ptr.hbm [resolvable:$true] %s167
          %s169 = sshll.u32 %s158, 4
          %s170 = int_to_ptr.vmem [resolvable:$true] %s169
          %172 = dma.hbm_to_vmem [thread:$0]  %s168, 256, %s170, %s155
        $region24: #{tpu_custom_call.1} parent=19 // pred_fallthru
          _
      $region20: #{tpu_custom_call.1} parent=5 // pred_fallthru
        _
      %p173 = scmp.le.s32.totalorder 1, %s16
      %p174 = scmp.lt.s32.totalorder %s16, 3
      %p175 = pnand %p173, %p174
      %p176 = pneg %p175
      // Predicated region
      $region25: #{tpu_custom_call.1} parent=5 // pred_check
        _
      $region26: #{tpu_custom_call.1} parent=5 // pred_check_branch
        %178 = sbr.rel (%p175) target = $region28
      $region27: #{tpu_custom_call.1} parent=5 // pred_region
        %s179 = ssub.s32 %s16, 1
        %s180 = sand.u32 %s43, 1
        %s181 = scalar_lea.sflag [#allocation3], %s180
        %s182 = sand.u32 %s43, 1
        %s183 = smul.addr %s182, 16
        %s184 = scalar_lea.vmem [#allocation2], %s183
        // Predicated region
        $region29: #{tpu_custom_call.1} parent=27 // pred_check
          %p185 = pneg %p56
        $region30: #{tpu_custom_call.1} parent=27 // pred_check_branch
          %187 = sbr.rel (%p185) target = $region32
        $region31: #{tpu_custom_call.1} parent=27 // pred_region
          %189 = dma.done %s181, 256
        $region32: #{tpu_custom_call.1} parent=27 // pred_fallthru
          _
        %s190 = sand.u32 %s43, 1
        %s191 = scalar_lea.sflag [#allocation3], %s190
        %s192 = sand.u32 %s43, 1
        %s193 = smul.addr %s192, 16
        %s194 = scalar_lea.vmem [#allocation2], %s193
        %p195 = pneg %p56
        %p196 = pneg %p53
        %p197 = pneg %p77
        %p198 = pneg %p74
        %p199 = pneg %p103
        %p200 = pneg %p100
        %p201 = scmp.lt.s32.totalorder %s25, 1
        %s202 = scalar_select %p201, %s25, 1
        %s203 = smul.addr %s202, 4
        %s204 = scalar_lea.vmem %s2, %s203
        %p205 = pneg %p129
        %p206 = pneg %p126
        %s207 = sand.u32 %s116, 1
        %s208 = scalar_lea.sflag [#allocation4], %s207
        %s209 = sand.u32 %s116, 1
        %s210 = smul.addr %s209, 4
        %s211 = scalar_lea.vmem [#allocation5], %s210
        %s212 = smul.u32 4, %s26
        %p213 = scmp.lt.s32.totalorder %s25, 1
        %s214 = scalar_select %p213, %s25, 1
        %s215 = smul.addr %s214, 4
        %s216 = scalar_lea.vmem %s2, %s215
        %p217 = scmp.eq.s32.totalorder %s26, 0
        // Predicated region
        $region33: #{tpu_custom_call.1} parent=27 // pred_check
          %p218 = pneg %p217
        $region34: #{tpu_custom_call.1} parent=27 // pred_check_branch
          %220 = sbr.rel (%p218) target = $region36
        $region35: #{tpu_custom_call.1} parent=27 // pred_region
          %vm221 = vcmask 3072
          %222 = vst.msk [vmem:[%s216] sm:$0xf] %vm221, 0.0
          %vm223 = vcmask 27648
          %224 = vst.msk [vmem:[%s211] sm:$0xf] %vm223, 0.0
        $region36: #{tpu_custom_call.1} parent=27 // pred_fallthru
          _
        %v225 = vld [vmem:[%s184] sm:$0xff]
        %v226 = vld [vmem:[%s184 + $0x8] sm:$0xff]
        %v227 = vld [vmem:[%s1] sm:$0xf]
        %229 = vset.pattern.permute.xlu0 0
        %230 = vperm.xlu0 %229, %v227
        %v231 = vpop.permute.xlu0 %230
        %v233 = vunpack.c.l.s4 839922192
        %v234 = vunpack.c.0.s8 %v233
        %v235 = vperm.slane %v231, %v234
        %v237 = vsub.f32 %v225, %v235
        %v238 = vsub.f32 %v226, %v235
        %v239 = vld [vmem:[%s216] sm:$0xf]
        %242 = vst [vmem:[#allocation1] ss:$2 sm:$0xff] %v237
        %s243 = scalar_lea.vmem [#allocation1], 16
        %244 = vst [vmem:[%s243] ss:$2 sm:$0xff] %v238
        %v245 = vld.sshfl [vmem:[#allocation1] sm:$0xff pattern:$0x75316420]
        %v246 = vld.sshfl [vmem:[#allocation1 + $0x8] sm:$0xff pattern:$0x75316420]
        %v247 = vld.sshfl [vmem:[#allocation1 + $0x10] sm:$0xff pattern:$0x75316420]
        %v248 = vld.sshfl [vmem:[#allocation1 + $0x18] sm:$0xff pattern:$0x75316420]
        %vm253 = vcmask 1043456
        %v254 = vsel %vm253, %v245, 0.0
        %v255 = vsel %vm253, %v246, 0.0
        %v256 = vadd.f32 %v254, %v255
        %v257 = vsel %vm253, %v247, 0.0
        %v258 = vadd.f32 %v256, %v257
        %v259 = vsel %vm253, %v248, 0.0
        %v260 = vadd.f32 %v258, %v259
        %261 = vadd.xlane.f32.xlu0 %v260
        %v262 = vpop.xlane.xlu0 %261
        %v263 = vadd.f32 %v239, %v262
        %vm264 = vcmask 3072
        %265 = vst.msk [vmem:[%s216] sm:$0xf] %vm264, %v263
        %v266 = vld [vmem:[%s211] sm:$0xf]
        %267 = vst [vmem:[#allocation1] ss:$2 sm:$0xff] %v237
        %s268 = scalar_lea.vmem [#allocation1], 16
        %269 = vst [vmem:[%s268] ss:$2 sm:$0xff] %v238
        %v270 = vld.sshfl [vmem:[#allocation1] sm:$0xff pattern:$0x75316420]
        %v271 = vld.sshfl [vmem:[#allocation1 + $0x8] sm:$0xff pattern:$0x75316420]
        %v272 = vld.sshfl [vmem:[#allocation1 + $0x10] sm:$0xff pattern:$0x75316420]
        %v273 = vld.sshfl [vmem:[#allocation1 + $0x18] sm:$0xff pattern:$0x75316420]
        %278 = vst [vmem:[#allocation1] ss:$2 sm:$0xff] %v237
        %s279 = scalar_lea.vmem [#allocation1], 16
        %280 = vst [vmem:[%s279] ss:$2 sm:$0xff] %v238
        %v281 = vld.sshfl [vmem:[#allocation1] sm:$0xff pattern:$0x75316420]
        %v282 = vld.sshfl [vmem:[#allocation1 + $0x8] sm:$0xff pattern:$0x75316420]
        %v283 = vld.sshfl [vmem:[#allocation1 + $0x10] sm:$0xff pattern:$0x75316420]
        %v284 = vld.sshfl [vmem:[#allocation1 + $0x18] sm:$0xff pattern:$0x75316420]
        %289 = vmatpush.xpose.msra.mxu0 0.0
        %290 = vmatpush.xpose.msra.mxu0 0.0
        %291 = vmatpush.xpose.msra.mxu0 0.0
        %292 = vmatpush.xpose.msra.mxu0 0.0
        %293 = vmatpush.xpose.msra.mxu0 0.0
        %294 = vmatpush.xpose.msra.mxu0 0.0
        %295 = vmatpush.xpose.msra.mxu0 0.0
        %296 = vmatpush.xpose.msra.mxu0 0.0
        %297 = vmatpush.xpose.msra.mxu0 0.0
        %298 = vmatpush.xpose.msra.mxu0 0.0
        %299 = vmatpush.xpose.msra.mxu0 0.0
        %300 = vmatpush.xpose.msra.mxu0 0.0
        %301 = vmatpush.xpose.msra.mxu0 0.0
        %302 = vmatpush.xpose.msra.mxu0 0.0
        %303 = vmatpush.xpose.msra.mxu0 0.0
        %304 = vmatpush.xpose.msra.mxu0 %v281
        %305 = vmatmul.f32.gmra.mxu0 %v270
        %v306 = vpop.f32.mrf.mxu0
        %v307 = vadd.f32 0.0, %v306
        %308 = vdwg.mxu0
        %309 = vmatpush.xpose.msra.mxu0 0.0
        %310 = vmatpush.xpose.msra.mxu0 0.0
        %311 = vmatpush.xpose.msra.mxu0 0.0
        %312 = vmatpush.xpose.msra.mxu0 0.0
        %313 = vmatpush.xpose.msra.mxu0 0.0
        %314 = vmatpush.xpose.msra.mxu0 0.0
        %315 = vmatpush.xpose.msra.mxu0 0.0
        %316 = vmatpush.xpose.msra.mxu0 0.0
        %317 = vmatpush.xpose.msra.mxu0 0.0
        %318 = vmatpush.xpose.msra.mxu0 0.0
        %319 = vmatpush.xpose.msra.mxu0 0.0
        %320 = vmatpush.xpose.msra.mxu0 0.0
        %321 = vmatpush.xpose.msra.mxu0 0.0
        %322 = vmatpush.xpose.msra.mxu0 0.0
        %323 = vmatpush.xpose.msra.mxu0 0.0
        %324 = vmatpush.xpose.msra.mxu0 %v282
        %325 = vmatmul.f32.gmra.mxu0 %v271
        %v326 = vpop.f32.mrf.mxu0
        %v327 = vadd.f32 %v307, %v326
        %328 = vdwg.mxu0
        %329 = vmatpush.xpose.msra.mxu0 0.0
        %330 = vmatpush.xpose.msra.mxu0 0.0
        %331 = vmatpush.xpose.msra.mxu0 0.0
        %332 = vmatpush.xpose.msra.mxu0 0.0
        %333 = vmatpush.xpose.msra.mxu0 0.0
        %334 = vmatpush.xpose.msra.mxu0 0.0
        %335 = vmatpush.xpose.msra.mxu0 0.0
        %336 = vmatpush.xpose.msra.mxu0 0.0
        %337 = vmatpush.xpose.msra.mxu0 0.0
        %338 = vmatpush.xpose.msra.mxu0 0.0
        %339 = vmatpush.xpose.msra.mxu0 0.0
        %340 = vmatpush.xpose.msra.mxu0 0.0
        %341 = vmatpush.xpose.msra.mxu0 0.0
        %342 = vmatpush.xpose.msra.mxu0 0.0
        %343 = vmatpush.xpose.msra.mxu0 0.0
        %344 = vmatpush.xpose.msra.mxu0 %v283
        %345 = vmatmul.f32.gmra.mxu0 %v272
        %v346 = vpop.f32.mrf.mxu0
        %v347 = vadd.f32 %v327, %v346
        %348 = vdwg.mxu0
        %349 = vmatpush.xpose.msra.mxu0 0.0
        %350 = vmatpush.xpose.msra.mxu0 0.0
        %351 = vmatpush.xpose.msra.mxu0 0.0
        %352 = vmatpush.xpose.msra.mxu0 0.0
        %353 = vmatpush.xpose.msra.mxu0 0.0
        %354 = vmatpush.xpose.msra.mxu0 0.0
        %355 = vmatpush.xpose.msra.mxu0 0.0
        %356 = vmatpush.xpose.msra.mxu0 0.0
        %357 = vmatpush.xpose.msra.mxu0 0.0
        %358 = vmatpush.xpose.msra.mxu0 0.0
        %359 = vmatpush.xpose.msra.mxu0 0.0
        %360 = vmatpush.xpose.msra.mxu0 0.0
        %361 = vmatpush.xpose.msra.mxu0 0.0
        %362 = vmatpush.xpose.msra.mxu0 0.0
        %363 = vmatpush.xpose.msra.mxu0 0.0
        %364 = vmatpush.xpose.msra.mxu0 %v284
        %365 = vmatmul.f32.gmra.mxu0 %v273
        %v366 = vpop.f32.mrf.mxu0
        %v367 = vadd.f32 %v347, %v366
        %368 = vdwg.mxu0
        %v369 = vadd.f32 %v266, %v367
        %vm370 = vcmask 27648
        %371 = vst.msk [vmem:[%s211] sm:$0xf] %vm370, %v369
        %p372 = scmp.lt.s32.totalorder %s25, 1
        %s373 = scalar_select %p372, %s25, 1
        %s374 = smul.addr %s373, 4
        %s375 = scalar_lea.vmem %s2, %s374
        %s376 = sand.u32 %s116, 1
        %s377 = scalar_lea.sflag [#allocation4], %s376
        %s378 = sand.u32 %s116, 1
        %s379 = smul.addr %s378, 4
        %s380 = scalar_lea.vmem [#allocation5], %s379
        // Predicated region
        $region37: #{tpu_custom_call.1} parent=27 // pred_check
          %p381 = pneg %p100
        $region38: #{tpu_custom_call.1} parent=27 // pred_check_branch
          %383 = sbr.rel (%p381) target = $region40
        $region39: #{tpu_custom_call.1} parent=27 // pred_region
          _
        $region40: #{tpu_custom_call.1} parent=27 // pred_fallthru
          _
        // Predicated region
        $region41: #{tpu_custom_call.1} parent=27 // pred_check
          %p384 = pneg %p126
        $region42: #{tpu_custom_call.1} parent=27 // pred_check_branch
          %386 = sbr.rel (%p384) target = $region44
        $region43: #{tpu_custom_call.1} parent=27 // pred_region
          %388 = vsyncadd %s377, 0
          %s389 = smul.addr %s25, 4
          %s390 = scalar_lea.hbm %s3, %s389
          %s392 = sshll.u32 %s380, 4
          %s393 = int_to_ptr.vmem [resolvable:$true] %s392
          %s394 = sshll.u32 %s390, 4
          %s395 = int_to_ptr.hbm [resolvable:$true] %s394
          %397 = dma.vmem_to_hbm [thread:$0]  %s393, 64, %s395, %s377
        $region44: #{tpu_custom_call.1} parent=27 // pred_fallthru
          _
      $region28: #{tpu_custom_call.1} parent=5 // pred_fallthru
        _
      %p398 = scmp.le.s32.totalorder 2, %s16
      // Predicated region
      $region45: #{tpu_custom_call.1} parent=5 // pred_check
        %p399 = pneg %p398
      $region46: #{tpu_custom_call.1} parent=5 // pred_check_branch
        %401 = sbr.rel (%p399) target = $region48
      $region47: #{tpu_custom_call.1} parent=5 // pred_region
        %s402 = ssub.s32 %s16, 2
        // Predicated region
        $region49: #{tpu_custom_call.1} parent=47 // pred_check
          %p403 = pneg %p106
        $region50: #{tpu_custom_call.1} parent=47 // pred_check_branch
          %405 = sbr.rel (%p403) target = $region52
        $region51: #{tpu_custom_call.1} parent=47 // pred_region
          %p406 = scmp.lt.s32.totalorder %s27, 1
          %s407 = scalar_select %p406, %s27, 1
          %s408 = smul.addr %s407, 4
          %s409 = scalar_lea.vmem %s2, %s408
        $region52: #{tpu_custom_call.1} parent=47 // pred_fallthru
          _
        // Predicated region
        $region53: #{tpu_custom_call.1} parent=47 // pred_check
          %p410 = pneg %p132
        $region54: #{tpu_custom_call.1} parent=47 // pred_check_branch
          %412 = sbr.rel (%p410) target = $region56
        $region55: #{tpu_custom_call.1} parent=47 // pred_region
          %s413 = sand.u32 %s117, 1
          %s414 = scalar_lea.sflag [#allocation4], %s413
          %s415 = sand.u32 %s117, 1
          %s416 = smul.addr %s415, 4
          %s417 = scalar_lea.vmem [#allocation5], %s416
          %419 = dma.done %s414, 64
        $region56: #{tpu_custom_call.1} parent=47 // pred_fallthru
          _
      $region48: #{tpu_custom_call.1} parent=5 // pred_fallthru
        _
    $region6: #{tpu_custom_call.1} parent=1 // loop_footer
      %s20 = sadd.s32 1, %s16
    $region7: #{tpu_custom_call.1} parent=1 // loop_footer_branch
      %15 = sbr.rel target = $region3
    $region8: #{tpu_custom_call.1} parent=1 // loop_exit
      _
    %420 = vsyncpa [#allocation3], 1
    %s421 = scalar_lea.sflag [#allocation3], 1
    %422 = vsyncpa %s421, 1
    %423 = vsyncpa [#allocation4], 1
    %s424 = scalar_lea.sflag [#allocation4], 1
    %425 = vsyncpa %s424, 1

</llo_original>
